<compile_context>
chip_gen: v7x
topology: tpu7x:2x2x1
jax: 0.10.0
libtpu: 0.0.40
codegen_flags: <defaults>
</compile_context>

<pallas_src>
import math

import jax
import jax.numpy as jnp
from jax.experimental import pallas as pl
from jax.experimental.pallas import tpu as pltpu


def ffn_kernel(x_ref, w1_ref, b1_ref, w2_ref, b2_ref, o_ref):
    # First linear: [tm, dim](bf16) @ [dim, hidden](bf16) -> f32 accum on the MXU.
    h = jnp.dot(x_ref[...], w1_ref[...], preferred_element_type=jnp.float32)
    h = h + b1_ref[...]  # f32 bias
    # Exact (erf) GELU in f32, matching PyTorch nn.GELU() default.
    h = 0.5 * h * (1.0 + jax.lax.erf(h * (1.0 / math.sqrt(2.0))))
    # (Dropout: identity at inference.)
    # Second linear: cast the activation back to bf16 for the MXU, f32 accum.
    y = jnp.dot(h.astype(w2_ref.dtype), w2_ref[...],
                preferred_element_type=jnp.float32)
    y = y + b2_ref[...]  # f32 bias
    o_ref[...] = y.astype(o_ref.dtype)


def _pick_row_tile(M, tm_req):
    """Largest row tile <= tm_req that is a multiple of 8 and divides M."""
    if M <= tm_req or M % 8 != 0:
        return M  # single full-extent block is always legal
    tm = (min(tm_req, M) // 8) * 8
    while M % tm != 0:
        tm -= 8
    return tm


def _vmem_limit_bytes(tm, dim, hidden):
    """Explicit VMEM budget: double-buffered x/out tiles + resident weights
    + f32 intermediate, with 2x slack; clamped to fit every TPU generation
    (v7x has 64 MiB per TensorCore)."""
    bf2, f4 = 2, 4
    est = (
        2 * tm * dim * bf2                  # x row tiles (bf16, double-buffered)
        + 2 * tm * dim * f4                 # output tiles (f32, double-buffered)
        + 2 * (dim * hidden + hidden * dim) * bf2   # weights (bf16)
        + 2 * (hidden + dim) * f4           # biases (f32)
        + 2 * tm * hidden * f4              # GELU intermediate (f32) + slack
    )
    return int(min(64 * 1024 * 1024, max(8 * 1024 * 1024, 2 * est)))


def feed_forward(x, w1, b1, w2, b2, *, tm=256):
    """x: [B, S, dim]  w1: [dim, hidden]  b1: [hidden]  w2: [hidden, dim]  b2: [dim]"""
    B, S, dim = x.shape
    hidden = w1.shape[1]
    M = B * S
    tm = _pick_row_tile(M, tm)

    # bf16 operands for the MXU (halves weight/activation DMA traffic too).
    x2 = x.reshape(M, dim).astype(jnp.bfloat16)
    w1_b = w1.astype(jnp.bfloat16)
    w2_b = w2.astype(jnp.bfloat16)
    b1_2 = b1.reshape(1, hidden).astype(jnp.float32)
    b2_2 = b2.reshape(1, dim).astype(jnp.float32)

    out = pl.pallas_call(
        ffn_kernel,
        out_shape=jax.ShapeDtypeStruct((M, dim), x.dtype),
        grid_spec=pltpu.PrefetchScalarGridSpec(
            num_scalar_prefetch=0,
            grid=(M // tm,),
            in_specs=[
                pl.BlockSpec((tm, dim), lambda i: (i, 0)),      # x row tile
                pl.BlockSpec((dim, hidden), lambda i: (0, 0)),  # w1 (resident)
                pl.BlockSpec((1, hidden), lambda i: (0, 0)),    # b1 (resident)
                pl.BlockSpec((hidden, dim), lambda i: (0, 0)),  # w2 (resident)
                pl.BlockSpec((1, dim), lambda i: (0, 0)),       # b2 (resident)
            ],
            out_specs=pl.BlockSpec((tm, dim), lambda i: (i, 0)),
        ),
        compiler_params=pltpu.CompilerParams(
            dimension_semantics=("parallel",),
            vmem_limit_bytes=_vmem_limit_bytes(tm, dim, hidden),
        ),
    )(x2, w1_b, b1_2, w2_b, b2_2)

    return out.reshape(B, S, dim)


if __name__ == "__main__":
    # Small shapes consistent with the module: dim=32, hidden_dim=128.
    # M = B*S = 512 rows -> row tile 256, grid of 2 (shards across v7x's 2 TCs).
    B, S, dim, hidden = 4, 128, 32, 128
    key = jax.random.PRNGKey(0)
    kx, kw1, kb1, kw2, kb2 = jax.random.split(key, 5)

    x = jax.random.normal(kx, (B, S, dim), dtype=jnp.float32)

    # Deterministic parameter init (PyTorch-Linear-style uniform bounds).
    bound1 = 1.0 / math.sqrt(dim)
    w1 = jax.random.uniform(kw1, (dim, hidden), jnp.float32, -bound1, bound1)
    b1 = jax.random.uniform(kb1, (hidden,), jnp.float32, -bound1, bound1)
    bound2 = 1.0 / math.sqrt(hidden)
    w2 = jax.random.uniform(kw2, (hidden, dim), jnp.float32, -bound2, bound2)
    b2 = jax.random.uniform(kb2, (dim,), jnp.float32, -bound2, bound2)

    y = feed_forward(x, w1, b1, w2, b2)
    y = jax.block_until_ready(y)

    hi = jax.lax.Precision.HIGHEST

    # Tight check against a reference that applies the same bf16 input rounding
    # (f32 accumulation), isolating only accumulation-order differences.
    def gelu(v):
        return 0.5 * v * (1.0 + jax.lax.erf(v / math.sqrt(2.0)))

    x_b = x.astype(jnp.bfloat16).astype(jnp.float32).reshape(-1, dim)
    w1_bf = w1.astype(jnp.bfloat16).astype(jnp.float32)
    w2_bf = w2.astype(jnp.bfloat16).astype(jnp.float32)
    h_ref = gelu(jnp.dot(x_b, w1_bf, precision=hi) + b1)
    h_ref_b = h_ref.astype(jnp.bfloat16).astype(jnp.float32)
    y_ref_bf16 = (jnp.dot(h_ref_b, w2_bf, precision=hi) + b2).reshape(B, S, dim)
    assert jnp.allclose(y, y_ref_bf16, atol=1e-4, rtol=1e-4), "bf16-path mismatch"

    # Loose check against the exact f32 PyTorch-equivalent forward
    # (bf16 matmul inputs => relaxed tolerance).
    h32 = gelu(jnp.dot(x.reshape(-1, dim), w1, precision=hi) + b1)
    y_ref_f32 = (jnp.dot(h32, w2, precision=hi) + b2).reshape(B, S, dim)
    assert jnp.allclose(y, y_ref_f32, atol=5e-2, rtol=5e-2), "f32 reference mismatch"

    print("KERNEL_OK")
</pallas_src>

<mosaic_0001>
module attributes {stable_mosaic.version = 11 : i64} {
  func.func @ffn_kernel(%arg0: i32, %arg1: memref<256x32xbf16, #tpu.memory_space<vmem>>, %arg2: memref<32x128xbf16, #tpu.memory_space<vmem>>, %arg3: memref<1x128xf32, #tpu.memory_space<vmem>>, %arg4: memref<128x32xbf16, #tpu.memory_space<vmem>>, %arg5: memref<1x32xf32, #tpu.memory_space<vmem>>, %arg6: memref<256x32xf32, #tpu.memory_space<vmem>>) attributes {dimension_semantics = [#tpu.dimension_semantics<parallel>], iteration_bounds = array<i64: 2>, scalar_prefetch = 0 : i64, scratch_operands = 0 : i64, tpu.core_type = #tpu.core_type<tc>, window_params = [{transform_indices = @transform_0, window_bounds = array<i64: 256, 32>}, {pipeline_mode = #tpu.pipeline_mode<synchronous>, transform_indices = @transform_1, window_bounds = array<i64: 32, 128>}, {pipeline_mode = #tpu.pipeline_mode<synchronous>, transform_indices = @transform_2, window_bounds = array<i64: 1, 128>}, {pipeline_mode = #tpu.pipeline_mode<synchronous>, transform_indices = @transform_3, window_bounds = array<i64: 128, 32>}, {pipeline_mode = #tpu.pipeline_mode<synchronous>, transform_indices = @transform_4, window_bounds = array<i64: 1, 32>}, {transform_indices = @transform_5, window_bounds = array<i64: 256, 32>}]} {
    %c0 = arith.constant 0 : index
    %c0_0 = arith.constant 0 : index
    %0 = vector.load %arg1[%c0, %c0_0] : memref<256x32xbf16, #tpu.memory_space<vmem>>, vector<256x32xbf16>
    %c0_1 = arith.constant 0 : index
    %c0_2 = arith.constant 0 : index
    %1 = vector.load %arg2[%c0_1, %c0_2] : memref<32x128xbf16, #tpu.memory_space<vmem>>, vector<32x128xbf16>
    %cst = arith.constant dense<0.000000e+00> : vector<256x128xf32>
    %2 = tpu.matmul %0, %1, %cst {dimension_numbers = #tpu.dot_dimension_numbers<[1], [0], [0], [1], [0, 0, 1, 1], [], []>} : vector<256x32xbf16>, vector<32x128xbf16>, vector<256x128xf32> -> vector<256x128xf32>
    %c0_3 = arith.constant 0 : index
    %c0_4 = arith.constant 0 : index
    %3 = vector.load %arg3[%c0_3, %c0_4] : memref<1x128xf32, #tpu.memory_space<vmem>>, vector<1x128xf32>
    %4 = vector.broadcast %3 : vector<1x128xf32> to vector<256x128xf32>
    %5 = arith.addf %2, %4 : vector<256x128xf32>
    %cst_5 = arith.constant 5.000000e-01 : f32
    %6 = vector.broadcast %cst_5 : f32 to vector<256x128xf32>
    %7 = arith.mulf %6, %5 : vector<256x128xf32>
    %cst_6 = arith.constant 0.707106769 : f32
    %8 = vector.broadcast %cst_6 : f32 to vector<256x128xf32>
    %9 = arith.mulf %5, %8 : vector<256x128xf32>
    %10 = math.erf %9 : vector<256x128xf32>
    %cst_7 = arith.constant 1.000000e+00 : f32
    %11 = vector.broadcast %cst_7 : f32 to vector<256x128xf32>
    %12 = arith.addf %11, %10 : vector<256x128xf32>
    %13 = arith.mulf %7, %12 : vector<256x128xf32>
    %14 = arith.truncf %13 : vector<256x128xf32> to vector<256x128xbf16>
    %c0_8 = arith.constant 0 : index
    %c0_9 = arith.constant 0 : index
    %15 = vector.load %arg4[%c0_8, %c0_9] : memref<128x32xbf16, #tpu.memory_space<vmem>>, vector<128x32xbf16>
    %cst_10 = arith.constant dense<0.000000e+00> : vector<256x32xf32>
    %16 = tpu.matmul %14, %15, %cst_10 {dimension_numbers = #tpu.dot_dimension_numbers<[1], [0], [0], [1], [0, 0, 1, 1], [], []>} : vector<256x128xbf16>, vector<128x32xbf16>, vector<256x32xf32> -> vector<256x32xf32>
    %c0_11 = arith.constant 0 : index
    %c0_12 = arith.constant 0 : index
    %17 = vector.load %arg5[%c0_11, %c0_12] : memref<1x32xf32, #tpu.memory_space<vmem>>, vector<1x32xf32>
    %18 = vector.broadcast %17 : vector<1x32xf32> to vector<256x32xf32>
    %19 = arith.addf %16, %18 : vector<256x32xf32>
    %c0_13 = arith.constant 0 : index
    %c0_14 = arith.constant 0 : index
    %20 = vector.load %arg6[%c0_13, %c0_14] : memref<256x32xf32, #tpu.memory_space<vmem>>, vector<256x32xf32>
    tpu.vector_store %arg6[%c0_13, %c0_14], %19 {strides = array<i32>} : memref<256x32xf32, #tpu.memory_space<vmem>>, vector<256x32xf32>,
    return
  }
  func.func @transform_0(%arg0: i32) -> (i32, i32) {
    %c0_i32 = arith.constant 0 : i32
    %c0_i32_0 = arith.constant 0 : i32
    return %arg0, %c0_i32 : i32, i32
  }
  func.func @transform_1(%arg0: i32) -> (i32, i32) {
    %c0_i32 = arith.constant 0 : i32
    %c0_i32_0 = arith.constant 0 : i32
    %c0_i32_1 = arith.constant 0 : i32
    return %c0_i32, %c0_i32_0 : i32, i32
  }
  func.func @transform_2(%arg0: i32) -> (i32, i32) {
    %c0_i32 = arith.constant 0 : i32
    %c0_i32_0 = arith.constant 0 : i32
    %c0_i32_1 = arith.constant 0 : i32
    return %c0_i32, %c0_i32_0 : i32, i32
  }
  func.func @transform_3(%arg0: i32) -> (i32, i32) {
    %c0_i32 = arith.constant 0 : i32
    %c0_i32_0 = arith.constant 0 : i32
    %c0_i32_1 = arith.constant 0 : i32
    return %c0_i32, %c0_i32_0 : i32, i32
  }
  func.func @transform_4(%arg0: i32) -> (i32, i32) {
    %c0_i32 = arith.constant 0 : i32
    %c0_i32_0 = arith.constant 0 : i32
    %c0_i32_1 = arith.constant 0 : i32
    return %c0_i32, %c0_i32_0 : i32, i32
  }
  func.func @transform_5(%arg0: i32) -> (i32, i32) {
    %c0_i32 = arith.constant 0 : i32
    %c0_i32_0 = arith.constant 0 : i32
    return %arg0, %c0_i32 : i32, i32
  }
}

</mosaic_0001>

<llo_original>
// kernel: tpu_custom_call.1
$region0: #{tpu_custom_call.1}
  #allocation0 [shape = 'u32[]', space=smem, size = 0x4, offset = 0x4, fixed_abs, tag = 'smem constant byte address 0x4 - core index']
  #allocation1 [shape = 'u32[144,128]{1,0:T(1,128)}', space=vmem, size = 0x12000, scoped, tag = 'internal scratch']
  %s0 = inlined_call_operand.vmem [shape: bf16[512,32], index: 0, kind: input, shape index: {}]
  %s1 = inlined_call_operand.vmem [shape: bf16[32,128], index: 1, kind: input, shape index: {}]
  %s2 = inlined_call_operand.vmem [shape: f32[1,128], index: 2, kind: input, shape index: {}]
  %s3 = inlined_call_operand.vmem [shape: bf16[128,32], index: 3, kind: input, shape index: {}]
  %s4 = inlined_call_operand.vmem [shape: f32[1,32], index: 4, kind: input, shape index: {}]
  %s5 = inlined_call_operand.vmem [shape: f32[512,32], index: 5, kind: output, shape index: {}]
  %s6 = sld [smem:[#allocation0]]
  $region53: #{tpu_custom_call.1} parent=0
    _
  %s8 = ssub.s32 1, %s6
  %s9 = scalar_select 0, %s8, %s6
  loop: start=0, step=1, limit=4
  $region2: #{tpu_custom_call.1} parent=0 // loop_pre_header
    _
  $region3: #{tpu_custom_call.1} parent=0 // loop_header
    %s11 = sphi 0, %s15
    %p12 = scmp.ge.s32.totalorder %s11, 4
    %s21 = sphi 0, %s23
    %s24 = sphi 0, %s21
    %s25 = sphi 0, %s24
    %s41 = sphi 0, %s25
    %s45 = sphi 0, %s45
    %s47 = sphi 0, %s45
    %s48 = sphi 0, %s47
    %s62 = sphi 0, %s48
    %s66 = sphi 0, %s66
    %s68 = sphi 0, %s66
    %s69 = sphi 0, %s68
    %s83 = sphi 0, %s69
    %s87 = sphi 0, %s87
    %s89 = sphi 0, %s87
    %s90 = sphi 0, %s89
    %s104 = sphi 0, %s90
    %s108 = sphi 0, %s108
    %s110 = sphi 0, %s108
    %s111 = sphi 0, %s110
    %s125 = sphi 0, %s111
    %s131 = sphi 0, %s133
    %s134 = sphi 0, %s131
    %s135 = sphi 0, %s134
    %s151 = sphi 0, %s135
  $region4: #{tpu_custom_call.1} parent=0 // loop_header_branch
    %14 = sbr.rel (%p12) target = $region8
  $region5: #{tpu_custom_call.1} parent=0 // loop_body
    %s16 = ssub.s32 %s11, 1
    %s17 = ssub.s32 %s11, 2
    %s18 = sadd.s32 %s11, 1
    %s19 = ssub.s32 %s11, %s18
    %p20 = scmp.eq.s32.totalorder %s19, 0
    %s22 = sadd.s32 %s21, 1
    %s23 = scalar_select %p20, %s21, %s22
    %p26 = pneg %p20
    %p27 = scmp.eq.s32.totalorder %s11, 1
    %p28 = por %p26, %p27
    %p29 = scmp.ne.s32.totalorder %s21, %s24
    %p30 = scmp.eq.s32.totalorder %s11, 0
    %p31 = por %p29, %p30
    %p32 = scmp.ne.s32.totalorder %s21, %s24
    %p33 = scmp.eq.s32.totalorder %s16, 1
    %p34 = por %p32, %p33
    %p35 = scmp.ne.s32.totalorder %s24, %s25
    %p36 = scmp.eq.s32.totalorder %s16, 0
    %p37 = por %p35, %p36
    %p38 = scmp.ne.s32.totalorder %s24, %s25
    %p39 = scmp.eq.s32.totalorder %s17, 1
    %p40 = por %p38, %p39
    %p42 = scmp.ne.s32.totalorder %s25, %s41
    %p43 = scmp.eq.s32.totalorder %s17, 0
    %p44 = por %p42, %p43
    %s46 = sadd.s32 %s45, 1
    %p49 = scmp.eq.s32.totalorder %s11, 1
    %p50 = scmp.ne.s32.totalorder %s45, %s47
    %p51 = scmp.eq.s32.totalorder %s11, 0
    %p52 = por %p50, %p51
    %p53 = scmp.ne.s32.totalorder %s45, %s47
    %p54 = scmp.eq.s32.totalorder %s16, 1
    %p55 = por %p53, %p54
    %p56 = scmp.ne.s32.totalorder %s47, %s48
    %p57 = scmp.eq.s32.totalorder %s16, 0
    %p58 = por %p56, %p57
    %p59 = scmp.ne.s32.totalorder %s47, %s48
    %p60 = scmp.eq.s32.totalorder %s17, 1
    %p61 = por %p59, %p60
    %p63 = scmp.ne.s32.totalorder %s48, %s62
    %p64 = scmp.eq.s32.totalorder %s17, 0
    %p65 = por %p63, %p64
    %s67 = sadd.s32 %s66, 1
    %p70 = scmp.eq.s32.totalorder %s11, 1
    %p71 = scmp.ne.s32.totalorder %s66, %s68
    %p72 = scmp.eq.s32.totalorder %s11, 0
    %p73 = por %p71, %p72
    %p74 = scmp.ne.s32.totalorder %s66, %s68
    %p75 = scmp.eq.s32.totalorder %s16, 1
    %p76 = por %p74, %p75
    %p77 = scmp.ne.s32.totalorder %s68, %s69
    %p78 = scmp.eq.s32.totalorder %s16, 0
    %p79 = por %p77, %p78
    %p80 = scmp.ne.s32.totalorder %s68, %s69
    %p81 = scmp.eq.s32.totalorder %s17, 1
    %p82 = por %p80, %p81
    %p84 = scmp.ne.s32.totalorder %s69, %s83
    %p85 = scmp.eq.s32.totalorder %s17, 0
    %p86 = por %p84, %p85
    %s88 = sadd.s32 %s87, 1
    %p91 = scmp.eq.s32.totalorder %s11, 1
    %p92 = scmp.ne.s32.totalorder %s87, %s89
    %p93 = scmp.eq.s32.totalorder %s11, 0
    %p94 = por %p92, %p93
    %p95 = scmp.ne.s32.totalorder %s87, %s89
    %p96 = scmp.eq.s32.totalorder %s16, 1
    %p97 = por %p95, %p96
    %p98 = scmp.ne.s32.totalorder %s89, %s90
    %p99 = scmp.eq.s32.totalorder %s16, 0
    %p100 = por %p98, %p99
    %p101 = scmp.ne.s32.totalorder %s89, %s90
    %p102 = scmp.eq.s32.totalorder %s17, 1
    %p103 = por %p101, %p102
    %p105 = scmp.ne.s32.totalorder %s90, %s104
    %p106 = scmp.eq.s32.totalorder %s17, 0
    %p107 = por %p105, %p106
    %s109 = sadd.s32 %s108, 1
    %p112 = scmp.eq.s32.totalorder %s11, 1
    %p113 = scmp.ne.s32.totalorder %s108, %s110
    %p114 = scmp.eq.s32.totalorder %s11, 0
    %p115 = por %p113, %p114
    %p116 = scmp.ne.s32.totalorder %s108, %s110
    %p117 = scmp.eq.s32.totalorder %s16, 1
    %p118 = por %p116, %p117
    %p119 = scmp.ne.s32.totalorder %s110, %s111
    %p120 = scmp.eq.s32.totalorder %s16, 0
    %p121 = por %p119, %p120
    %p122 = scmp.ne.s32.totalorder %s110, %s111
    %p123 = scmp.eq.s32.totalorder %s17, 1
    %p124 = por %p122, %p123
    %p126 = scmp.ne.s32.totalorder %s111, %s125
    %p127 = scmp.eq.s32.totalorder %s17, 0
    %p128 = por %p126, %p127
    %s129 = ssub.s32 %s11, %s18
    %p130 = scmp.eq.s32.totalorder %s129, 0
    %s132 = sadd.s32 %s131, 1
    %s133 = scalar_select %p130, %s131, %s132
    %p136 = pneg %p130
    %p137 = scmp.eq.s32.totalorder %s11, 1
    %p138 = por %p136, %p137
    %p139 = scmp.ne.s32.totalorder %s131, %s134
    %p140 = scmp.eq.s32.totalorder %s11, 0
    %p141 = por %p139, %p140
    %p142 = scmp.ne.s32.totalorder %s131, %s134
    %p143 = scmp.eq.s32.totalorder %s16, 1
    %p144 = por %p142, %p143
    %p145 = scmp.ne.s32.totalorder %s134, %s135
    %p146 = scmp.eq.s32.totalorder %s16, 0
    %p147 = por %p145, %p146
    %p148 = scmp.ne.s32.totalorder %s134, %s135
    %p149 = scmp.eq.s32.totalorder %s17, 1
    %p150 = por %p148, %p149
    %p152 = scmp.ne.s32.totalorder %s135, %s151
    %p153 = scmp.eq.s32.totalorder %s17, 0
    %p154 = por %p152, %p153
    %p155 = scmp.le.s32.totalorder 1, %s11
    %p156 = scmp.lt.s32.totalorder %s11, 3
    %p157 = pnand %p155, %p156
    %p158 = pneg %p157
    // Predicated region
    $region9: #{tpu_custom_call.1} parent=5 // pred_check
      _
    $region10: #{tpu_custom_call.1} parent=5 // pred_check_branch
      %160 = sbr.rel (%p157) target = $region12
    $region11: #{tpu_custom_call.1} parent=5 // pred_region
      %s161 = ssub.s32 %s11, 1
      // Predicated region
      $region13: #{tpu_custom_call.1} parent=11 // pred_check
        %p162 = pneg %p58
      $region14: #{tpu_custom_call.1} parent=11 // pred_check_branch
        %164 = sbr.rel (%p162) target = $region16
      $region15: #{tpu_custom_call.1} parent=11 // pred_region
        _
      $region16: #{tpu_custom_call.1} parent=11 // pred_fallthru
        _
      // Predicated region
      $region17: #{tpu_custom_call.1} parent=11 // pred_check
        %p165 = pneg %p79
      $region18: #{tpu_custom_call.1} parent=11 // pred_check_branch
        %167 = sbr.rel (%p165) target = $region20
      $region19: #{tpu_custom_call.1} parent=11 // pred_region
        _
      $region20: #{tpu_custom_call.1} parent=11 // pred_fallthru
        _
      // Predicated region
      $region21: #{tpu_custom_call.1} parent=11 // pred_check
        %p168 = pneg %p100
      $region22: #{tpu_custom_call.1} parent=11 // pred_check_branch
        %170 = sbr.rel (%p168) target = $region24
      $region23: #{tpu_custom_call.1} parent=11 // pred_region
        _
      $region24: #{tpu_custom_call.1} parent=11 // pred_fallthru
        _
      // Predicated region
      $region25: #{tpu_custom_call.1} parent=11 // pred_check
        %p171 = pneg %p121
      $region26: #{tpu_custom_call.1} parent=11 // pred_check_branch
        %173 = sbr.rel (%p171) target = $region28
      $region27: #{tpu_custom_call.1} parent=11 // pred_region
        _
      $region28: #{tpu_custom_call.1} parent=11 // pred_fallthru
        _
    $region12: #{tpu_custom_call.1} parent=5 // pred_fallthru
      _
    %p174 = scmp.lt.s32.totalorder %s11, 2
    // Predicated region
    $region29: #{tpu_custom_call.1} parent=5 // pred_check
      %p175 = pneg %p174
    $region30: #{tpu_custom_call.1} parent=5 // pred_check_branch
      %177 = sbr.rel (%p175) target = $region32
    $region31: #{tpu_custom_call.1} parent=5 // pred_region
      // Predicated region
      $region33: #{tpu_custom_call.1} parent=31 // pred_check
        %p178 = pneg %p31
      $region34: #{tpu_custom_call.1} parent=31 // pred_check_branch
        %180 = sbr.rel (%p178) target = $region36
      $region35: #{tpu_custom_call.1} parent=31 // pred_region
        %s181 = smul.u32 32, %s11
        %p182 = scmp.lt.s32.totalorder %s181, 63
        %s183 = scalar_select %p182, %s181, 63
        %s184 = smul.addr %s183, 4
        %s185 = scalar_lea.vmem %s0, %s184
        %s186 = smul.u32 32, %s11
      $region36: #{tpu_custom_call.1} parent=31 // pred_fallthru
        _
    $region32: #{tpu_custom_call.1} parent=5 // pred_fallthru
      _
    %p187 = scmp.le.s32.totalorder 1, %s11
    %p188 = scmp.lt.s32.totalorder %s11, 3
    %p189 = pnand %p187, %p188
    %p190 = pneg %p189
    // Predicated region
    $region37: #{tpu_custom_call.1} parent=5 // pred_check
      _
    $region38: #{tpu_custom_call.1} parent=5 // pred_check_branch
      %192 = sbr.rel (%p189) target = $region40
    $region39: #{tpu_custom_call.1} parent=5 // pred_region
      %s193 = ssub.s32 %s11, 1
      %s194 = smul.u32 32, %s16
      %p195 = scmp.lt.s32.totalorder %s194, 63
      %s196 = scalar_select %p195, %s194, 63
      %s197 = smul.addr %s196, 4
      %s198 = scalar_lea.vmem %s0, %s197
      %p199 = pneg %p37
      %p200 = pneg %p34
      %p201 = pneg %p58
      %p202 = pneg %p55
      %p203 = pneg %p79
      %p204 = pneg %p76
      %p205 = pneg %p100
      %p206 = pneg %p97
      %p207 = pneg %p121
      %p208 = pneg %p118
      %p209 = pneg %p147
      %p210 = pneg %p144
      %s211 = smul.u32 32, %s16
      %p212 = scmp.lt.s32.totalorder %s211, 63
      %s213 = scalar_select %p212, %s211, 63
      %s214 = smul.addr %s213, 8
      %s215 = scalar_lea.vmem %s5, %s214
      %s216 = smul.u32 32, %s16
      %p217 = scmp.lt.s32.totalorder %s216, 63
      %s218 = scalar_select %p217, %s216, 63
      %s219 = smul.addr %s218, 4
      %s220 = scalar_lea.vmem %s0, %s219
      %s221 = smul.u32 32, %s16
      %s222 = smul.u32 32, %s16
      %p223 = scmp.lt.s32.totalorder %s222, 63
      %s224 = scalar_select %p223, %s222, 63
      %s225 = smul.addr %s224, 8
      %s226 = scalar_lea.vmem %s5, %s225
      %s227 = smul.u32 32, %s16
      %v229 = vld [vmem:[%s220] sm:$0xf]
      %v230 = vld [vmem:[%s220 + $0x4] sm:$0xf]
      %v231 = vld [vmem:[%s220 + $0x8] sm:$0xf]
      %v232 = vld [vmem:[%s220 + $0xc] sm:$0xf]
      %v233 = vld [vmem:[%s220 + $0x10] sm:$0xf]
      %v234 = vld [vmem:[%s220 + $0x14] sm:$0xf]
      %v235 = vld [vmem:[%s220 + $0x18] sm:$0xf]
      %v236 = vld [vmem:[%s220 + $0x1c] sm:$0xf]
      %v237 = vld [vmem:[%s220 + $0x20] sm:$0xf]
      %v238 = vld [vmem:[%s220 + $0x24] sm:$0xf]
      %v239 = vld [vmem:[%s220 + $0x28] sm:$0xf]
      %v240 = vld [vmem:[%s220 + $0x2c] sm:$0xf]
      %v241 = vld [vmem:[%s220 + $0x30] sm:$0xf]
      %v242 = vld [vmem:[%s220 + $0x34] sm:$0xf]
      %v243 = vld [vmem:[%s220 + $0x38] sm:$0xf]
      %v244 = vld [vmem:[%s220 + $0x3c] sm:$0xf]
      %v245 = vld [vmem:[%s220 + $0x40] sm:$0xf]
      %v246 = vld [vmem:[%s220 + $0x44] sm:$0xf]
      %v247 = vld [vmem:[%s220 + $0x48] sm:$0xf]
      %v248 = vld [vmem:[%s220 + $0x4c] sm:$0xf]
      %v249 = vld [vmem:[%s220 + $0x50] sm:$0xf]
      %v250 = vld [vmem:[%s220 + $0x54] sm:$0xf]
      %v251 = vld [vmem:[%s220 + $0x58] sm:$0xf]
      %v252 = vld [vmem:[%s220 + $0x5c] sm:$0xf]
      %v253 = vld [vmem:[%s220 + $0x60] sm:$0xf]
      %v254 = vld [vmem:[%s220 + $0x64] sm:$0xf]
      %v255 = vld [vmem:[%s220 + $0x68] sm:$0xf]
      %v256 = vld [vmem:[%s220 + $0x6c] sm:$0xf]
      %v257 = vld [vmem:[%s220 + $0x70] sm:$0xf]
      %v258 = vld [vmem:[%s220 + $0x74] sm:$0xf]
      %v259 = vld [vmem:[%s220 + $0x78] sm:$0xf]
      %v260 = vld [vmem:[%s220 + $0x7c] sm:$0xf]
      %v261 = vld [vmem:[%s1] sm:$0xf]
      %v262 = vld [vmem:[%s1 + $0x4] sm:$0xf]
      %v263 = vld [vmem:[%s1 + $0x8] sm:$0xf]
      %v264 = vld [vmem:[%s1 + $0xc] sm:$0xf]
      %v265 = vld [vmem:[%s2] sm:$0x1]
      %v267 = vlaneseq
      %v268 = vshrl.u32 %v267, 7
      %v269 = vsub.s32 0, %v268
      %v270 = vrot.slane %v265, %v269
      %v304 = vunpack.c.l.b16 %v229
      %v305 = vunpack.c.l.b16 %v230
      %v306 = vunpack.c.l.b16 %v231
      %v307 = vunpack.c.l.b16 %v232
      %v308 = vunpack.c.l.b16 %v233
      %v309 = vunpack.c.l.b16 %v234
      %v310 = vunpack.c.l.b16 %v235
      %v311 = vunpack.c.l.b16 %v236
      %v312 = vunpack.c.l.b16 %v237
      %v313 = vunpack.c.l.b16 %v238
      %v314 = vunpack.c.l.b16 %v239
      %v315 = vunpack.c.l.b16 %v240
      %v316 = vunpack.c.l.b16 %v241
      %v317 = vunpack.c.l.b16 %v242
      %v318 = vunpack.c.l.b16 %v243
      %v319 = vunpack.c.l.b16 %v244
      %v320 = vunpack.c.l.b16 %v245
      %v321 = vunpack.c.l.b16 %v246
      %v322 = vunpack.c.l.b16 %v247
      %v323 = vunpack.c.l.b16 %v248
      %v324 = vunpack.c.l.b16 %v249
      %v325 = vunpack.c.l.b16 %v250
      %v326 = vunpack.c.l.b16 %v251
      %v327 = vunpack.c.l.b16 %v252
      %v328 = vunpack.c.l.b16 %v253
      %v329 = vunpack.c.l.b16 %v254
      %v330 = vunpack.c.l.b16 %v255
      %v331 = vunpack.c.l.b16 %v256
      %v332 = vunpack.c.l.b16 %v257
      %v333 = vunpack.c.l.b16 %v258
      %v334 = vunpack.c.l.b16 %v259
      %v335 = vunpack.c.l.b16 %v260
      %v336 = vpack.c.b16 %v305, %v304
      %v337 = vpack.c.b16 %v307, %v306
      %v338 = vpack.c.b16 %v309, %v308
      %v339 = vpack.c.b16 %v311, %v310
      %v340 = vpack.c.b16 %v313, %v312
      %v341 = vpack.c.b16 %v315, %v314
      %v342 = vpack.c.b16 %v317, %v316
      %v343 = vpack.c.b16 %v319, %v318
      %v344 = vpack.c.b16 %v321, %v320
      %v345 = vpack.c.b16 %v323, %v322
      %v346 = vpack.c.b16 %v325, %v324
      %v347 = vpack.c.b16 %v327, %v326
      %v348 = vpack.c.b16 %v329, %v328
      %v349 = vpack.c.b16 %v331, %v330
      %v350 = vpack.c.b16 %v333, %v332
      %v351 = vpack.c.b16 %v335, %v334
      %v356 = vunpack.c.l.b16 %v261
      %v357 = vunpack.c.l.b16 %v262
      %v358 = vunpack.c.l.b16 %v263
      %v359 = vunpack.c.l.b16 %v264
      %v360 = vpack.c.b16 %v357, %v356
      %v361 = vpack.c.b16 %v359, %v358
      %vm364 = vcmask 261120
      %v366 = vsel %vm364, %v336, 0
      %v369 = vsel %vm364, %v337, 0
      %v372 = vsel %vm364, %v338, 0
      %v375 = vsel %vm364, %v339, 0
      %v378 = vsel %vm364, %v340, 0
      %v381 = vsel %vm364, %v341, 0
      %v384 = vsel %vm364, %v342, 0
      %v387 = vsel %vm364, %v343, 0
      %v390 = vsel %vm364, %v344, 0
      %v393 = vsel %vm364, %v345, 0
      %v396 = vsel %vm364, %v346, 0
      %v399 = vsel %vm364, %v347, 0
      %v402 = vsel %vm364, %v348, 0
      %v405 = vsel %vm364, %v349, 0
      %v408 = vsel %vm364, %v350, 0
      %v411 = vsel %vm364, %v351, 0
      %413 = vmatprep.subr.bf16.mxu0 0
      %414 = vmatpush1.bf16.msra.mxu0 %v360
      %415 = vmatprep.subr.bf16.mxu0 0
      %416 = vmatpush1.bf16.msra.mxu0 %v361
      %417 = vmatprep.subr.bf16.mxu0 0
      %418 = vmatpush1.bf16.msra.mxu0 0
      %419 = vmatprep.subr.bf16.mxu0 0
      %420 = vmatpush1.bf16.msra.mxu0 0
      %421 = vmatprep.subr.bf16.mxu0 0
      %422 = vmatpush1.bf16.msra.mxu0 0
      %423 = vmatprep.subr.bf16.mxu0 0
      %424 = vmatpush1.bf16.msra.mxu0 0
      %425 = vmatprep.subr.bf16.mxu0 0
      %426 = vmatpush1.bf16.msra.mxu0 0
      %427 = vmatprep.subr.bf16.mxu0 0
      %428 = vmatpush1.bf16.msra.mxu0 0
      %429 = vmatprep.subr.bf16.mxu0 0
      %430 = vmatpush1.bf16.msra.mxu0 0
      %431 = vmatprep.subr.bf16.mxu0 0
      %432 = vmatpush1.bf16.msra.mxu0 0
      %433 = vmatprep.subr.bf16.mxu0 0
      %434 = vmatpush1.bf16.msra.mxu0 0
      %435 = vmatprep.subr.bf16.mxu0 0
      %436 = vmatpush1.bf16.msra.mxu0 0
      %437 = vmatprep.subr.bf16.mxu0 0
      %438 = vmatpush1.bf16.msra.mxu0 0
      %439 = vmatprep.subr.bf16.mxu0 0
      %440 = vmatpush1.bf16.msra.mxu0 0
      %441 = vmatprep.subr.bf16.mxu0 0
      %442 = vmatpush1.bf16.msra.mxu0 0
      %443 = vmatprep.subr.bf16.mxu0 0
      %444 = vmatpush1.bf16.msra.mxu0 0
      %445 = vmatprep.mubr.bf16.mxu0 0
      %446 = vmatmul.mubr.bf16.gmra.mrb[0].mxu0 %v366
      %v447 = vpop.f32.mrb[0].mxu0
      %v448 = vadd.f32 %v270, %v447
      %v449 = vpop.f32.mrb[0].mxu0
      %v450 = vpop.f32.mrb[0].mxu0
      %v451 = vadd.f32 %v270, %v450
      %v452 = vpop.f32.mrb[0].mxu0
      %453 = vmatprep.mubr.bf16.mxu0 0
      %454 = vmatmul.mubr.bf16.gmra.mrb[0].mxu0 %v369
      %v455 = vpop.f32.mrb[0].mxu0
      %v456 = vadd.f32 %v270, %v455
      %v457 = vpop.f32.mrb[0].mxu0
      %v458 = vpop.f32.mrb[0].mxu0
      %v459 = vadd.f32 %v270, %v458
      %v460 = vpop.f32.mrb[0].mxu0
      %461 = vmatprep.mubr.bf16.mxu0 0
      %462 = vmatmul.mubr.bf16.gmra.mrb[0].mxu0 %v372
      %v463 = vpop.f32.mrb[0].mxu0
      %v464 = vadd.f32 %v270, %v463
      %v465 = vpop.f32.mrb[0].mxu0
      %v466 = vpop.f32.mrb[0].mxu0
      %v467 = vadd.f32 %v270, %v466
      %v468 = vpop.f32.mrb[0].mxu0
      %469 = vmatprep.mubr.bf16.mxu0 0
      %470 = vmatmul.mubr.bf16.gmra.mrb[0].mxu0 %v375
      %v471 = vpop.f32.mrb[0].mxu0
      %v472 = vadd.f32 %v270, %v471
      %v473 = vpop.f32.mrb[0].mxu0
      %v474 = vpop.f32.mrb[0].mxu0
      %v475 = vadd.f32 %v270, %v474
      %v476 = vpop.f32.mrb[0].mxu0
      %477 = vmatprep.mubr.bf16.mxu0 0
      %478 = vmatmul.mubr.bf16.gmra.mrb[0].mxu0 %v378
      %v479 = vpop.f32.mrb[0].mxu0
      %v480 = vadd.f32 %v270, %v479
      %v481 = vpop.f32.mrb[0].mxu0
      %v482 = vpop.f32.mrb[0].mxu0
      %v483 = vadd.f32 %v270, %v482
      %v484 = vpop.f32.mrb[0].mxu0
      %485 = vmatprep.mubr.bf16.mxu0 0
      %486 = vmatmul.mubr.bf16.gmra.mrb[0].mxu0 %v381
      %v487 = vpop.f32.mrb[0].mxu0
      %v488 = vadd.f32 %v270, %v487
      %v489 = vpop.f32.mrb[0].mxu0
      %v490 = vpop.f32.mrb[0].mxu0
      %v491 = vadd.f32 %v270, %v490
      %v492 = vpop.f32.mrb[0].mxu0
      %493 = vmatprep.mubr.bf16.mxu0 0
      %494 = vmatmul.mubr.bf16.gmra.mrb[0].mxu0 %v384
      %v495 = vpop.f32.mrb[0].mxu0
      %v496 = vadd.f32 %v270, %v495
      %v497 = vpop.f32.mrb[0].mxu0
      %v498 = vpop.f32.mrb[0].mxu0
      %v499 = vadd.f32 %v270, %v498
      %v500 = vpop.f32.mrb[0].mxu0
      %501 = vmatprep.mubr.bf16.mxu0 0
      %502 = vmatmul.mubr.bf16.gmra.mrb[0].mxu0 %v387
      %v503 = vpop.f32.mrb[0].mxu0
      %v504 = vadd.f32 %v270, %v503
      %v505 = vpop.f32.mrb[0].mxu0
      %v506 = vpop.f32.mrb[0].mxu0
      %v507 = vadd.f32 %v270, %v506
      %v508 = vpop.f32.mrb[0].mxu0
      %509 = vmatprep.mubr.bf16.mxu0 0
      %510 = vmatmul.mubr.bf16.gmra.mrb[0].mxu0 %v390
      %v511 = vpop.f32.mrb[0].mxu0
      %v512 = vadd.f32 %v270, %v511
      %v513 = vpop.f32.mrb[0].mxu0
      %v514 = vpop.f32.mrb[0].mxu0
      %v515 = vadd.f32 %v270, %v514
      %v516 = vpop.f32.mrb[0].mxu0
      %517 = vmatprep.mubr.bf16.mxu0 0
      %518 = vmatmul.mubr.bf16.gmra.mrb[0].mxu0 %v393
      %v519 = vpop.f32.mrb[0].mxu0
      %v520 = vadd.f32 %v270, %v519
      %v521 = vpop.f32.mrb[0].mxu0
      %v522 = vpop.f32.mrb[0].mxu0
      %v523 = vadd.f32 %v270, %v522
      %v524 = vpop.f32.mrb[0].mxu0
      %525 = vmatprep.mubr.bf16.mxu0 0
      %526 = vmatmul.mubr.bf16.gmra.mrb[0].mxu0 %v396
      %v527 = vpop.f32.mrb[0].mxu0
      %v528 = vadd.f32 %v270, %v527
      %v529 = vpop.f32.mrb[0].mxu0
      %v530 = vpop.f32.mrb[0].mxu0
      %v531 = vadd.f32 %v270, %v530
      %v532 = vpop.f32.mrb[0].mxu0
      %533 = vmatprep.mubr.bf16.mxu0 0
      %534 = vmatmul.mubr.bf16.gmra.mrb[0].mxu0 %v399
      %v535 = vpop.f32.mrb[0].mxu0
      %v536 = vadd.f32 %v270, %v535
      %v537 = vpop.f32.mrb[0].mxu0
      %v538 = vpop.f32.mrb[0].mxu0
      %v539 = vadd.f32 %v270, %v538
      %v540 = vpop.f32.mrb[0].mxu0
      %541 = vmatprep.mubr.bf16.mxu0 0
      %542 = vmatmul.mubr.bf16.gmra.mrb[0].mxu0 %v402
      %v543 = vpop.f32.mrb[0].mxu0
      %v544 = vadd.f32 %v270, %v543
      %v545 = vpop.f32.mrb[0].mxu0
      %v546 = vpop.f32.mrb[0].mxu0
      %v547 = vadd.f32 %v270, %v546
      %v548 = vpop.f32.mrb[0].mxu0
      %549 = vmatprep.mubr.bf16.mxu0 0
      %550 = vmatmul.mubr.bf16.gmra.mrb[0].mxu0 %v405
      %v551 = vpop.f32.mrb[0].mxu0
      %v552 = vadd.f32 %v270, %v551
      %v553 = vpop.f32.mrb[0].mxu0
      %v554 = vpop.f32.mrb[0].mxu0
      %v555 = vadd.f32 %v270, %v554
      %v556 = vpop.f32.mrb[0].mxu0
      %557 = vmatprep.mubr.bf16.mxu0 0
      %558 = vmatmul.mubr.bf16.gmra.mrb[0].mxu0 %v408
      %v559 = vpop.f32.mrb[0].mxu0
      %v560 = vadd.f32 %v270, %v559
      %v561 = vpop.f32.mrb[0].mxu0
      %v562 = vpop.f32.mrb[0].mxu0
      %v563 = vadd.f32 %v270, %v562
      %v564 = vpop.f32.mrb[0].mxu0
      %565 = vmatprep.mubr.bf16.mxu0 0
      %566 = vmatmul.mubr.bf16.gmra.mrb[0].mxu0 %v411
      %v567 = vpop.f32.mrb[0].mxu0
      %v568 = vadd.f32 %v270, %v567
      %v569 = vpop.f32.mrb[0].mxu0
      %v570 = vpop.f32.mrb[0].mxu0
      %v571 = vadd.f32 %v270, %v570
      %v572 = vpop.f32.mrb[0].mxu0
      %573 = vdwg.mxu0
      %v574 = vmul.f32 %v448, 0.5
      %v575 = vmul.f32 %v451, 0.5
      %v576 = vmul.f32 %v456, 0.5
      %v577 = vmul.f32 %v459, 0.5
      %v578 = vmul.f32 %v464, 0.5
      %v579 = vmul.f32 %v467, 0.5
      %v580 = vmul.f32 %v472, 0.5
      %v581 = vmul.f32 %v475, 0.5
      %v582 = vmul.f32 %v480, 0.5
      %v583 = vmul.f32 %v483, 0.5
      %v584 = vmul.f32 %v488, 0.5
      %v585 = vmul.f32 %v491, 0.5
      %v586 = vmul.f32 %v496, 0.5
      %v587 = vmul.f32 %v499, 0.5
      %v588 = vmul.f32 %v504, 0.5
      %v589 = vmul.f32 %v507, 0.5
      %v590 = vmul.f32 %v512, 0.5
      %v591 = vmul.f32 %v515, 0.5
      %v592 = vmul.f32 %v520, 0.5
      %v593 = vmul.f32 %v523, 0.5
      %v594 = vmul.f32 %v528, 0.5
      %v595 = vmul.f32 %v531, 0.5
      %v596 = vmul.f32 %v536, 0.5
      %v597 = vmul.f32 %v539, 0.5
      %v598 = vmul.f32 %v544, 0.5
      %v599 = vmul.f32 %v547, 0.5
      %v600 = vmul.f32 %v552, 0.5
      %v601 = vmul.f32 %v555, 0.5
      %v602 = vmul.f32 %v560, 0.5
      %v603 = vmul.f32 %v563, 0.5
      %v604 = vmul.f32 %v568, 0.5
      %v605 = vmul.f32 %v571, 0.5
      %v606 = vmul.f32 %v448, 0.70710677
      %v607 = vmul.f32 %v451, 0.70710677
      %v608 = vmul.f32 %v456, 0.70710677
      %v609 = vmul.f32 %v459, 0.70710677
      %v610 = vmul.f32 %v464, 0.70710677
      %v611 = vmul.f32 %v467, 0.70710677
      %v612 = vmul.f32 %v472, 0.70710677
      %v613 = vmul.f32 %v475, 0.70710677
      %v614 = vmul.f32 %v480, 0.70710677
      %v615 = vmul.f32 %v483, 0.70710677
      %v616 = vmul.f32 %v488, 0.70710677
      %v617 = vmul.f32 %v491, 0.70710677
      %v618 = vmul.f32 %v496, 0.70710677
      %v619 = vmul.f32 %v499, 0.70710677
      %v620 = vmul.f32 %v504, 0.70710677
      %v621 = vmul.f32 %v507, 0.70710677
      %v622 = vmul.f32 %v512, 0.70710677
      %v623 = vmul.f32 %v515, 0.70710677
      %v624 = vmul.f32 %v520, 0.70710677
      %v625 = vmul.f32 %v523, 0.70710677
      %v626 = vmul.f32 %v528, 0.70710677
      %v627 = vmul.f32 %v531, 0.70710677
      %v628 = vmul.f32 %v536, 0.70710677
      %v629 = vmul.f32 %v539, 0.70710677
      %v630 = vmul.f32 %v544, 0.70710677
      %v631 = vmul.f32 %v547, 0.70710677
      %v632 = vmul.f32 %v552, 0.70710677
      %v633 = vmul.f32 %v555, 0.70710677
      %v634 = vmul.f32 %v560, 0.70710677
      %v635 = vmul.f32 %v563, 0.70710677
      %v636 = vmul.f32 %v568, 0.70710677
      %v637 = vmul.f32 %v571, 0.70710677
      %v638 = verf.f32.pop %v606
      %v639 = verf.f32.pop %v607
      %v640 = verf.f32.pop %v608
      %v641 = verf.f32.pop %v609
      %v642 = verf.f32.pop %v610
      %v643 = verf.f32.pop %v611
      %v644 = verf.f32.pop %v612
      %v645 = verf.f32.pop %v613
      %v646 = verf.f32.pop %v614
      %v647 = verf.f32.pop %v615
      %v648 = verf.f32.pop %v616
      %v649 = verf.f32.pop %v617
      %v650 = verf.f32.pop %v618
      %v651 = verf.f32.pop %v619
      %v652 = verf.f32.pop %v620
      %v653 = verf.f32.pop %v621
      %v654 = verf.f32.pop %v622
      %v655 = verf.f32.pop %v623
      %v656 = verf.f32.pop %v624
      %v657 = verf.f32.pop %v625
      %v658 = verf.f32.pop %v626
      %v659 = verf.f32.pop %v627
      %v660 = verf.f32.pop %v628
      %v661 = verf.f32.pop %v629
      %v662 = verf.f32.pop %v630
      %v663 = verf.f32.pop %v631
      %v664 = verf.f32.pop %v632
      %v665 = verf.f32.pop %v633
      %v666 = verf.f32.pop %v634
      %v667 = verf.f32.pop %v635
      %v668 = verf.f32.pop %v636
      %v669 = verf.f32.pop %v637
      %v670 = vadd.f32 %v638, 1.0
      %v671 = vadd.f32 %v639, 1.0
      %v672 = vadd.f32 %v640, 1.0
      %v673 = vadd.f32 %v641, 1.0
      %v674 = vadd.f32 %v642, 1.0
      %v675 = vadd.f32 %v643, 1.0
      %v676 = vadd.f32 %v644, 1.0
      %v677 = vadd.f32 %v645, 1.0
      %v678 = vadd.f32 %v646, 1.0
      %v679 = vadd.f32 %v647, 1.0
      %v680 = vadd.f32 %v648, 1.0
      %v681 = vadd.f32 %v649, 1.0
      %v682 = vadd.f32 %v650, 1.0
      %v683 = vadd.f32 %v651, 1.0
      %v684 = vadd.f32 %v652, 1.0
      %v685 = vadd.f32 %v653, 1.0
      %v686 = vadd.f32 %v654, 1.0
      %v687 = vadd.f32 %v655, 1.0
      %v688 = vadd.f32 %v656, 1.0
      %v689 = vadd.f32 %v657, 1.0
      %v690 = vadd.f32 %v658, 1.0
      %v691 = vadd.f32 %v659, 1.0
      %v692 = vadd.f32 %v660, 1.0
      %v693 = vadd.f32 %v661, 1.0
      %v694 = vadd.f32 %v662, 1.0
      %v695 = vadd.f32 %v663, 1.0
      %v696 = vadd.f32 %v664, 1.0
      %v697 = vadd.f32 %v665, 1.0
      %v698 = vadd.f32 %v666, 1.0
      %v699 = vadd.f32 %v667, 1.0
      %v700 = vadd.f32 %v668, 1.0
      %v701 = vadd.f32 %v669, 1.0
      %v702 = vmul.f32 %v574, %v670
      %v703 = vmul.f32 %v575, %v671
      %v704 = vmul.f32 %v576, %v672
      %v705 = vmul.f32 %v577, %v673
      %v706 = vmul.f32 %v578, %v674
      %v707 = vmul.f32 %v579, %v675
      %v708 = vmul.f32 %v580, %v676
      %v709 = vmul.f32 %v581, %v677
      %v710 = vmul.f32 %v582, %v678
      %v711 = vmul.f32 %v583, %v679
      %v712 = vmul.f32 %v584, %v680
      %v713 = vmul.f32 %v585, %v681
      %v714 = vmul.f32 %v586, %v682
      %v715 = vmul.f32 %v587, %v683
      %v716 = vmul.f32 %v588, %v684
      %v717 = vmul.f32 %v589, %v685
      %v718 = vmul.f32 %v590, %v686
      %v719 = vmul.f32 %v591, %v687
      %v720 = vmul.f32 %v592, %v688
      %v721 = vmul.f32 %v593, %v689
      %v722 = vmul.f32 %v594, %v690
      %v723 = vmul.f32 %v595, %v691
      %v724 = vmul.f32 %v596, %v692
      %v725 = vmul.f32 %v597, %v693
      %v726 = vmul.f32 %v598, %v694
      %v727 = vmul.f32 %v599, %v695
      %v728 = vmul.f32 %v600, %v696
      %v729 = vmul.f32 %v601, %v697
      %v730 = vmul.f32 %v602, %v698
      %v731 = vmul.f32 %v603, %v699
      %v732 = vmul.f32 %v604, %v700
      %v733 = vmul.f32 %v605, %v701
      %v734 = vpack.c.bf16 %v703, %v702
      %v735 = vpack.c.bf16 %v705, %v704
      %v736 = vpack.c.bf16 %v707, %v706
      %v737 = vpack.c.bf16 %v709, %v708
      %v738 = vpack.c.bf16 %v711, %v710
      %v739 = vpack.c.bf16 %v713, %v712
      %v740 = vpack.c.bf16 %v715, %v714
      %v741 = vpack.c.bf16 %v717, %v716
      %v742 = vpack.c.bf16 %v719, %v718
      %v743 = vpack.c.bf16 %v721, %v720
      %v744 = vpack.c.bf16 %v723, %v722
      %v745 = vpack.c.bf16 %v725, %v724
      %v746 = vpack.c.bf16 %v727, %v726
      %v747 = vpack.c.bf16 %v729, %v728
      %v748 = vpack.c.bf16 %v731, %v730
      %v749 = vpack.c.bf16 %v733, %v732
      %v750 = vld [vmem:[%s3] sm:$0xf]
      %v751 = vld [vmem:[%s3 + $0x4] sm:$0xf]
      %v752 = vld [vmem:[%s3 + $0x8] sm:$0xf]
      %v753 = vld [vmem:[%s3 + $0xc] sm:$0xf]
      %v754 = vld [vmem:[%s3 + $0x10] sm:$0xf]
      %v755 = vld [vmem:[%s3 + $0x14] sm:$0xf]
      %v756 = vld [vmem:[%s3 + $0x18] sm:$0xf]
      %v757 = vld [vmem:[%s3 + $0x1c] sm:$0xf]
      %v758 = vld [vmem:[%s3 + $0x20] sm:$0xf]
      %v759 = vld [vmem:[%s3 + $0x24] sm:$0xf]
      %v760 = vld [vmem:[%s3 + $0x28] sm:$0xf]
      %v761 = vld [vmem:[%s3 + $0x2c] sm:$0xf]
      %v762 = vld [vmem:[%s3 + $0x30] sm:$0xf]
      %v763 = vld [vmem:[%s3 + $0x34] sm:$0xf]
      %v764 = vld [vmem:[%s3 + $0x38] sm:$0xf]
      %v765 = vld [vmem:[%s3 + $0x3c] sm:$0xf]
      %v766 = vld [vmem:[%s4] sm:$0x1]
      %v768 = vlaneseq
      %v769 = vshrl.u32 %v768, 7
      %v770 = vsub.s32 0, %v769
      %v771 = vrot.slane %v766, %v770
      %v789 = vunpack.c.l.b16 %v750
      %v790 = vunpack.c.l.b16 %v751
      %v791 = vunpack.c.l.b16 %v752
      %v792 = vunpack.c.l.b16 %v753
      %v793 = vunpack.c.l.b16 %v754
      %v794 = vunpack.c.l.b16 %v755
      %v795 = vunpack.c.l.b16 %v756
      %v796 = vunpack.c.l.b16 %v757
      %v797 = vunpack.c.l.b16 %v758
      %v798 = vunpack.c.l.b16 %v759
      %v799 = vunpack.c.l.b16 %v760
      %v800 = vunpack.c.l.b16 %v761
      %v801 = vunpack.c.l.b16 %v762
      %v802 = vunpack.c.l.b16 %v763
      %v803 = vunpack.c.l.b16 %v764
      %v804 = vunpack.c.l.b16 %v765
      %v805 = vpack.c.b16 %v790, %v789
      %v806 = vpack.c.b16 %v792, %v791
      %v807 = vpack.c.b16 %v794, %v793
      %v808 = vpack.c.b16 %v796, %v795
      %v809 = vpack.c.b16 %v798, %v797
      %v810 = vpack.c.b16 %v800, %v799
      %v811 = vpack.c.b16 %v802, %v801
      %v812 = vpack.c.b16 %v804, %v803
      %821 = vmatprep.subr.bf16.mxu0 0
      %822 = vmatpush1.bf16.msra.mxu0 %v805
      %823 = vmatprep.subr.bf16.mxu0 0
      %824 = vmatpush1.bf16.msra.mxu0 %v806
      %825 = vmatprep.subr.bf16.mxu0 0
      %826 = vmatpush1.bf16.msra.mxu0 %v807
      %827 = vmatprep.subr.bf16.mxu0 0
      %828 = vmatpush1.bf16.msra.mxu0 %v808
      %829 = vmatprep.subr.bf16.mxu0 0
      %830 = vmatpush1.bf16.msra.mxu0 %v809
      %831 = vmatprep.subr.bf16.mxu0 0
      %832 = vmatpush1.bf16.msra.mxu0 %v810
      %833 = vmatprep.subr.bf16.mxu0 0
      %834 = vmatpush1.bf16.msra.mxu0 %v811
      %835 = vmatprep.subr.bf16.mxu0 0
      %836 = vmatpush1.bf16.msra.mxu0 %v812
      %837 = vmatprep.subr.bf16.mxu0 0
      %838 = vmatpush1.bf16.msra.mxu0 0
      %839 = vmatprep.subr.bf16.mxu0 0
      %840 = vmatpush1.bf16.msra.mxu0 0
      %841 = vmatprep.subr.bf16.mxu0 0
      %842 = vmatpush1.bf16.msra.mxu0 0
      %843 = vmatprep.subr.bf16.mxu0 0
      %844 = vmatpush1.bf16.msra.mxu0 0
      %845 = vmatprep.subr.bf16.mxu0 0
      %846 = vmatpush1.bf16.msra.mxu0 0
      %847 = vmatprep.subr.bf16.mxu0 0
      %848 = vmatpush1.bf16.msra.mxu0 0
      %849 = vmatprep.subr.bf16.mxu0 0
      %850 = vmatpush1.bf16.msra.mxu0 0
      %851 = vmatprep.subr.bf16.mxu0 0
      %852 = vmatpush1.bf16.msra.mxu0 0
      %853 = vmatprep.mubr.bf16.mxu0 0
      %854 = vmatmul.mubr.bf16.gmra.mrb[0].mxu0 %v734
      %v855 = vpop.f32.mrb[0].mxu0
      %v856 = vadd.f32 %v771, %v855
      %v857 = vpop.f32.mrb[0].mxu0
      %v858 = vpop.f32.mrb[0].mxu0
      %v859 = vadd.f32 %v771, %v858
      %v860 = vpop.f32.mrb[0].mxu0
      %861 = vmatprep.mubr.bf16.mxu0 0
      %862 = vmatmul.mubr.bf16.gmra.mrb[0].mxu0 %v735
      %v863 = vpop.f32.mrb[0].mxu0
      %v864 = vadd.f32 %v771, %v863
      %v865 = vpop.f32.mrb[0].mxu0
      %v866 = vpop.f32.mrb[0].mxu0
      %v867 = vadd.f32 %v771, %v866
      %v868 = vpop.f32.mrb[0].mxu0
      %869 = vmatprep.mubr.bf16.mxu0 0
      %870 = vmatmul.mubr.bf16.gmra.mrb[0].mxu0 %v736
      %v871 = vpop.f32.mrb[0].mxu0
      %v872 = vadd.f32 %v771, %v871
      %v873 = vpop.f32.mrb[0].mxu0
      %v874 = vpop.f32.mrb[0].mxu0
      %v875 = vadd.f32 %v771, %v874
      %v876 = vpop.f32.mrb[0].mxu0
      %877 = vmatprep.mubr.bf16.mxu0 0
      %878 = vmatmul.mubr.bf16.gmra.mrb[0].mxu0 %v737
      %v879 = vpop.f32.mrb[0].mxu0
      %v880 = vadd.f32 %v771, %v879
      %v881 = vpop.f32.mrb[0].mxu0
      %v882 = vpop.f32.mrb[0].mxu0
      %v883 = vadd.f32 %v771, %v882
      %v884 = vpop.f32.mrb[0].mxu0
      %885 = vmatprep.mubr.bf16.mxu0 0
      %886 = vmatmul.mubr.bf16.gmra.mrb[0].mxu0 %v738
      %v887 = vpop.f32.mrb[0].mxu0
      %v888 = vadd.f32 %v771, %v887
      %v889 = vpop.f32.mrb[0].mxu0
      %v890 = vpop.f32.mrb[0].mxu0
      %v891 = vadd.f32 %v771, %v890
      %v892 = vpop.f32.mrb[0].mxu0
      %893 = vmatprep.mubr.bf16.mxu0 0
      %894 = vmatmul.mubr.bf16.gmra.mrb[0].mxu0 %v739
      %v895 = vpop.f32.mrb[0].mxu0
      %v896 = vadd.f32 %v771, %v895
      %v897 = vpop.f32.mrb[0].mxu0
      %v898 = vpop.f32.mrb[0].mxu0
      %v899 = vadd.f32 %v771, %v898
      %v900 = vpop.f32.mrb[0].mxu0
      %901 = vmatprep.mubr.bf16.mxu0 0
      %902 = vmatmul.mubr.bf16.gmra.mrb[0].mxu0 %v740
      %v903 = vpop.f32.mrb[0].mxu0
      %v904 = vadd.f32 %v771, %v903
      %v905 = vpop.f32.mrb[0].mxu0
      %v906 = vpop.f32.mrb[0].mxu0
      %v907 = vadd.f32 %v771, %v906
      %v908 = vpop.f32.mrb[0].mxu0
      %909 = vmatprep.mubr.bf16.mxu0 0
      %910 = vmatmul.mubr.bf16.gmra.mrb[0].mxu0 %v741
      %v911 = vpop.f32.mrb[0].mxu0
      %v912 = vadd.f32 %v771, %v911
      %v913 = vpop.f32.mrb[0].mxu0
      %v914 = vpop.f32.mrb[0].mxu0
      %v915 = vadd.f32 %v771, %v914
      %v916 = vpop.f32.mrb[0].mxu0
      %917 = vmatprep.mubr.bf16.mxu0 0
      %918 = vmatmul.mubr.bf16.gmra.mrb[0].mxu0 %v742
      %v919 = vpop.f32.mrb[0].mxu0
      %v920 = vadd.f32 %v771, %v919
      %v921 = vpop.f32.mrb[0].mxu0
      %v922 = vpop.f32.mrb[0].mxu0
      %v923 = vadd.f32 %v771, %v922
      %v924 = vpop.f32.mrb[0].mxu0
      %925 = vmatprep.mubr.bf16.mxu0 0
      %926 = vmatmul.mubr.bf16.gmra.mrb[0].mxu0 %v743
      %v927 = vpop.f32.mrb[0].mxu0
      %v928 = vadd.f32 %v771, %v927
      %v929 = vpop.f32.mrb[0].mxu0
      %v930 = vpop.f32.mrb[0].mxu0
      %v931 = vadd.f32 %v771, %v930
      %v932 = vpop.f32.mrb[0].mxu0
      %933 = vmatprep.mubr.bf16.mxu0 0
      %934 = vmatmul.mubr.bf16.gmra.mrb[0].mxu0 %v744
      %v935 = vpop.f32.mrb[0].mxu0
      %v936 = vadd.f32 %v771, %v935
      %v937 = vpop.f32.mrb[0].mxu0
      %v938 = vpop.f32.mrb[0].mxu0
      %v939 = vadd.f32 %v771, %v938
      %v940 = vpop.f32.mrb[0].mxu0
      %941 = vmatprep.mubr.bf16.mxu0 0
      %942 = vmatmul.mubr.bf16.gmra.mrb[0].mxu0 %v745
      %v943 = vpop.f32.mrb[0].mxu0
      %v944 = vadd.f32 %v771, %v943
      %v945 = vpop.f32.mrb[0].mxu0
      %v946 = vpop.f32.mrb[0].mxu0
      %v947 = vadd.f32 %v771, %v946
      %v948 = vpop.f32.mrb[0].mxu0
      %949 = vmatprep.mubr.bf16.mxu0 0
      %950 = vmatmul.mubr.bf16.gmra.mrb[0].mxu0 %v746
      %v951 = vpop.f32.mrb[0].mxu0
      %v952 = vadd.f32 %v771, %v951
      %v953 = vpop.f32.mrb[0].mxu0
      %v954 = vpop.f32.mrb[0].mxu0
      %v955 = vadd.f32 %v771, %v954
      %v956 = vpop.f32.mrb[0].mxu0
      %957 = vmatprep.mubr.bf16.mxu0 0
      %958 = vmatmul.mubr.bf16.gmra.mrb[0].mxu0 %v747
      %v959 = vpop.f32.mrb[0].mxu0
      %v960 = vadd.f32 %v771, %v959
      %v961 = vpop.f32.mrb[0].mxu0
      %v962 = vpop.f32.mrb[0].mxu0
      %v963 = vadd.f32 %v771, %v962
      %v964 = vpop.f32.mrb[0].mxu0
      %965 = vmatprep.mubr.bf16.mxu0 0
      %966 = vmatmul.mubr.bf16.gmra.mrb[0].mxu0 %v748
      %v967 = vpop.f32.mrb[0].mxu0
      %v968 = vadd.f32 %v771, %v967
      %v969 = vpop.f32.mrb[0].mxu0
      %v970 = vpop.f32.mrb[0].mxu0
      %v971 = vadd.f32 %v771, %v970
      %v972 = vpop.f32.mrb[0].mxu0
      %973 = vmatprep.mubr.bf16.mxu0 0
      %974 = vmatmul.mubr.bf16.gmra.mrb[0].mxu0 %v749
      %v975 = vpop.f32.mrb[0].mxu0
      %v976 = vadd.f32 %v771, %v975
      %v977 = vpop.f32.mrb[0].mxu0
      %v978 = vpop.f32.mrb[0].mxu0
      %v979 = vadd.f32 %v771, %v978
      %v980 = vpop.f32.mrb[0].mxu0
      %981 = vdwg.mxu0
      %982 = vst.msk [vmem:[%s226] sm:$0xff] %vm364, %v856
      %983 = vst.msk [vmem:[%s226 + $0x8] sm:$0xff] %vm364, %v859
      %984 = vst.msk [vmem:[%s226 + $0x10] sm:$0xff] %vm364, %v864
      %985 = vst.msk [vmem:[%s226 + $0x18] sm:$0xff] %vm364, %v867
      %986 = vst.msk [vmem:[%s226 + $0x20] sm:$0xff] %vm364, %v872
      %987 = vst.msk [vmem:[%s226 + $0x28] sm:$0xff] %vm364, %v875
      %988 = vst.msk [vmem:[%s226 + $0x30] sm:$0xff] %vm364, %v880
      %989 = vst.msk [vmem:[%s226 + $0x38] sm:$0xff] %vm364, %v883
      %990 = vst.msk [vmem:[%s226 + $0x40] sm:$0xff] %vm364, %v888
      %991 = vst.msk [vmem:[%s226 + $0x48] sm:$0xff] %vm364, %v891
      %992 = vst.msk [vmem:[%s226 + $0x50] sm:$0xff] %vm364, %v896
      %993 = vst.msk [vmem:[%s226 + $0x58] sm:$0xff] %vm364, %v899
      %994 = vst.msk [vmem:[%s226 + $0x60] sm:$0xff] %vm364, %v904
      %995 = vst.msk [vmem:[%s226 + $0x68] sm:$0xff] %vm364, %v907
      %996 = vst.msk [vmem:[%s226 + $0x70] sm:$0xff] %vm364, %v912
      %997 = vst.msk [vmem:[%s226 + $0x78] sm:$0xff] %vm364, %v915
      %998 = vst.msk [vmem:[%s226 + $0x80] sm:$0xff] %vm364, %v920
      %999 = vst.msk [vmem:[%s226 + $0x88] sm:$0xff] %vm364, %v923
      %1000 = vst.msk [vmem:[%s226 + $0x90] sm:$0xff] %vm364, %v928
      %1001 = vst.msk [vmem:[%s226 + $0x98] sm:$0xff] %vm364, %v931
      %1002 = vst.msk [vmem:[%s226 + $0xa0] sm:$0xff] %vm364, %v936
      %1003 = vst.msk [vmem:[%s226 + $0xa8] sm:$0xff] %vm364, %v939
      %1004 = vst.msk [vmem:[%s226 + $0xb0] sm:$0xff] %vm364, %v944
      %1005 = vst.msk [vmem:[%s226 + $0xb8] sm:$0xff] %vm364, %v947
      %1006 = vst.msk [vmem:[%s226 + $0xc0] sm:$0xff] %vm364, %v952
      %1007 = vst.msk [vmem:[%s226 + $0xc8] sm:$0xff] %vm364, %v955
      %1008 = vst.msk [vmem:[%s226 + $0xd0] sm:$0xff] %vm364, %v960
      %1009 = vst.msk [vmem:[%s226 + $0xd8] sm:$0xff] %vm364, %v963
      %1010 = vst.msk [vmem:[%s226 + $0xe0] sm:$0xff] %vm364, %v968
      %1011 = vst.msk [vmem:[%s226 + $0xe8] sm:$0xff] %vm364, %v971
      %1012 = vst.msk [vmem:[%s226 + $0xf0] sm:$0xff] %vm364, %v976
      %1013 = vst.msk [vmem:[%s226 + $0xf8] sm:$0xff] %vm364, %v979
      %s1014 = smul.u32 32, %s16
      %p1015 = scmp.lt.s32.totalorder %s1014, 63
      %s1016 = scalar_select %p1015, %s1014, 63
      %s1017 = smul.addr %s1016, 8
      %s1018 = scalar_lea.vmem %s5, %s1017
      // Predicated region
      $region41: #{tpu_custom_call.1} parent=39 // pred_check
        %p1019 = pneg %p144
      $region42: #{tpu_custom_call.1} parent=39 // pred_check_branch
        %1021 = sbr.rel (%p1019) target = $region44
      $region43: #{tpu_custom_call.1} parent=39 // pred_region
        %s1022 = smul.u32 32, %s16
      $region44: #{tpu_custom_call.1} parent=39 // pred_fallthru
        _
    $region40: #{tpu_custom_call.1} parent=5 // pred_fallthru
      _
    %p1023 = scmp.le.s32.totalorder 2, %s11
    // Predicated region
    $region45: #{tpu_custom_call.1} parent=5 // pred_check
      %p1024 = pneg %p1023
    $region46: #{tpu_custom_call.1} parent=5 // pred_check_branch
      %1026 = sbr.rel (%p1024) target = $region48
    $region47: #{tpu_custom_call.1} parent=5 // pred_region
      %s1027 = ssub.s32 %s11, 2
      // Predicated region
      $region49: #{tpu_custom_call.1} parent=47 // pred_check
        %p1028 = pneg %p150
      $region50: #{tpu_custom_call.1} parent=47 // pred_check_branch
        %1030 = sbr.rel (%p1028) target = $region52
      $region51: #{tpu_custom_call.1} parent=47 // pred_region
        %s1031 = smul.u32 32, %s17
        %p1032 = scmp.lt.s32.totalorder %s1031, 63
        %s1033 = scalar_select %p1032, %s1031, 63
        %s1034 = smul.addr %s1033, 8
        %s1035 = scalar_lea.vmem %s5, %s1034
      $region52: #{tpu_custom_call.1} parent=47 // pred_fallthru
        _
    $region48: #{tpu_custom_call.1} parent=5 // pred_fallthru
      _
  $region6: #{tpu_custom_call.1} parent=0 // loop_footer
    %s15 = sadd.s32 1, %s11
  $region7: #{tpu_custom_call.1} parent=0 // loop_footer_branch
    %10 = sbr.rel target = $region3
  $region8: #{tpu_custom_call.1} parent=0 // loop_exit
    _

</llo_original>
